<compile_context>
chip_gen: v7x
topology: tpu7x:2x2x1
jax: 0.10.0
libtpu: 0.0.40
codegen_flags: <defaults>
</compile_context>

<pallas_src>
import functools

import jax
import jax.numpy as jnp
from jax import lax
from jax.experimental import pallas as pl
from jax.experimental.pallas import tpu as pltpu

POWER_ITERATIONS = 1
EPS = 1e-12


# ----------------------------------------------------------------------------
# Pallas kernel: power iteration (VPU/XLU) overlapped with conv-as-matmul (MXU)
# ----------------------------------------------------------------------------
def _sn_conv_kernel(w_ref, u_ref, v_ref, patches_ref, bias_ref,
                    out_ref, u_out_ref, v_out_ref, *, n_imgs, s_img):
    # w_ref:       (O, K)     flattened conv weight, K = C*KH*KW
    # u_ref:       (O, 1)     left singular vector estimate (column)
    # v_ref:       (1, K)     right singular vector estimate (row)
    # patches_ref: (K, M)     im2col patches, M = N*OH*OW (lane-dense)
    # bias_ref:    (O, 1)
    # out_ref:     (N, O, S)  S = OH*OW, lane-dense per-image slabs
    w = w_ref[...]

    # conv as matmul with the UNSCALED weight: independent of the power
    # iteration, so the MXU work issues immediately and overlaps the chain.
    raw = jnp.dot(w, patches_ref[...], preferred_element_type=jnp.float32)  # (O, M)

    # power iteration entirely on VPU/XLU/EUP (no tiny MXU matmuls)
    u = u_ref[...]                                            # (O, 1)
    v = v_ref[...]                                            # (1, K)
    u_raw = None
    for _ in range(POWER_ITERATIONS):                         # static unroll
        # v = l2normalize(W^T u): sublane-reduce of (w * u) over O
        v_raw = jnp.sum(w * u, axis=0, keepdims=True)         # (1, K)
        v = v_raw * lax.rsqrt(jnp.sum(v_raw * v_raw, keepdims=True) + EPS * EPS)
        # u = l2normalize(W v): lane-reduce of (w * v) over K
        u_raw = jnp.sum(w * v, axis=1, keepdims=True)         # (O, 1)
        u = u_raw * lax.rsqrt(jnp.sum(u_raw * u_raw, keepdims=True) + EPS * EPS)

    # sigma = u . (W v); W v is exactly u_raw from the last iteration
    sigma = jnp.sum(u * u_raw, keepdims=True)                 # (1, 1)
    inv_sigma = pl.reciprocal(sigma, approx=False)            # exact: scales whole output

    # scale + bias, written as NCHW-friendly (N, O, S) slabs; slice starts are
    # multiples of 256 lanes -> full unmasked stores.
    bias = bias_ref[...]                                      # (O, 1)
    for n in range(n_imgs):                                   # static trip count
        sl = raw[:, n * s_img:(n + 1) * s_img]                # (O, S)
        out_ref[n] = (sl * inv_sigma + bias).astype(out_ref.dtype)

    u_out_ref[...] = u.astype(u_out_ref.dtype)
    v_out_ref[...] = v.astype(v_out_ref.dtype)


# ----------------------------------------------------------------------------
# Wrapper: im2col glue + pallas_call, all under one jit
# ----------------------------------------------------------------------------
@jax.jit
def spectral_norm_conv2d(x, w_bar, bias, u, v):
    """x: (N, C, H, W) NCHW; w_bar: (O, C, KH, KW) OIHW; bias: (O,);
    u: (O,); v: (C*KH*KW,). Conv: stride 1, padding 1 ('same' for 3x3)."""
    N, C, H, W = x.shape
    O, Ci, KH, KW = w_bar.shape
    assert Ci == C
    OH, OW = H, W                                   # stride 1, pad 1, 3x3
    K = C * KH * KW
    S = OH * OW
    M = N * S

    # --- im2col directly in (K, M) layout (fuses into one fusion under jit) --
    # k = c*KH*KW + kh*KW + kw  (matches w_bar.reshape(O, K));  m = n*S + oh*OW + ow
    xc = jnp.transpose(x, (1, 0, 2, 3))                       # (C, N, H, W)
    xp = jnp.pad(xc, ((0, 0), (0, 0), (1, 1), (1, 1)))
    cols = [xp[:, :, kh:kh + OH, kw:kw + OW]                  # (C, N, OH, OW)
            for kh in range(KH) for kw in range(KW)]
    patches = jnp.stack(cols, axis=1).reshape(K, M)           # (K, M)
    # TODO(synk): building the (K, M) patches fully in-kernel needs a
    # lane-crossing reshape that Mosaic would materialize anyway; the im2col is
    # kept in the same jit so it costs one fused launch, not several.

    w_mat = w_bar.reshape(O, K)
    u_col = u.reshape(O, 1)
    v_row = v.reshape(1, K)
    b_col = bias.reshape(O, 1)

    cost = pl.CostEstimate(
        flops=2 * M * K * O + 6 * O * K + 2 * O * M,
        transcendentals=3,
        bytes_accessed=4 * (M * K + O * K + O * M + 3 * O + 2 * K + 1),
    )

    vmem = lambda: pl.BlockSpec(memory_space=pltpu.MemorySpace.VMEM)
    kernel = functools.partial(_sn_conv_kernel, n_imgs=N, s_img=S)

    out3, u_new, v_new = pl.pallas_call(
        kernel,
        out_shape=(
            jax.ShapeDtypeStruct((N, O, S), jnp.float32),
            jax.ShapeDtypeStruct((O, 1), jnp.float32),
            jax.ShapeDtypeStruct((1, K), jnp.float32),
        ),
        in_specs=[vmem(), vmem(), vmem(), vmem(), vmem()],
        out_specs=(vmem(), vmem(), vmem()),
        cost_estimate=cost,
    )(w_mat, u_col, v_row, patches, b_col)

    out = out3.reshape(N, O, OH, OW)                          # free reshape, no transpose
    return out, u_new.reshape(O), v_new.reshape(K)


# ----------------------------------------------------------------------------
# Pure-JAX reference (mirrors the PyTorch module exactly)
# ----------------------------------------------------------------------------
def reference_forward(x, w_bar, bias, u, v):
    O = w_bar.shape[0]
    wm = w_bar.reshape(O, -1)
    for _ in range(POWER_ITERATIONS):
        v_ = wm.T @ u
        v = v_ / (jnp.linalg.norm(v_) + EPS)
        u_ = wm @ v
        u = u_ / (jnp.linalg.norm(u_) + EPS)
    sigma = u @ (wm @ v)
    w_sn = w_bar / sigma
    out = lax.conv_general_dilated(
        x, w_sn, window_strides=(1, 1), padding=((1, 1), (1, 1)),
        dimension_numbers=("NCHW", "OIHW", "NCHW"))
    return out + bias[None, :, None, None]


if __name__ == "__main__":
    N, C, H, W = 2, 4, 16, 16
    O, KH, KW = 8, 3, 3
    K = C * KH * KW

    key = jax.random.PRNGKey(0)
    kx, kw, kb, ku, kv = jax.random.split(key, 5)

    x = jax.random.normal(kx, (N, C, H, W), dtype=jnp.float32)
    w_bar = 0.1 * jax.random.normal(kw, (O, C, KH, KW), dtype=jnp.float32)
    bias = 0.1 * jax.random.normal(kb, (O,), dtype=jnp.float32)

    # _make_params: u, v ~ N(0,1) then l2-normalized
    u0 = jax.random.normal(ku, (O,), dtype=jnp.float32)
    v0 = jax.random.normal(kv, (K,), dtype=jnp.float32)
    u0 = u0 / (jnp.linalg.norm(u0) + EPS)
    v0 = v0 / (jnp.linalg.norm(v0) + EPS)

    out, u_new, v_new = spectral_norm_conv2d(x, w_bar, bias, u0, v0)
    out = jax.block_until_ready(out)

    ref = reference_forward(x, w_bar, bias, u0, v0)
    assert out.shape == (N, O, H, W)
    assert jnp.allclose(out, ref, atol=1e-4, rtol=1e-4), "mismatch vs reference"

    print("KERNEL_OK")
</pallas_src>

<mosaic_0001>
module attributes {stable_mosaic.version = 11 : i64} {
  func.func @_sn_conv_kernel(%arg0: memref<8x36xf32, #tpu.memory_space<vmem>>, %arg1: memref<8x1xf32, #tpu.memory_space<vmem>>, %arg2: memref<1x36xf32, #tpu.memory_space<vmem>>, %arg3: memref<36x512xf32, #tpu.memory_space<vmem>>, %arg4: memref<8x1xf32, #tpu.memory_space<vmem>>, %arg5: memref<2x8x256xf32, #tpu.memory_space<vmem>>, %arg6: memref<8x1xf32, #tpu.memory_space<vmem>>, %arg7: memref<1x36xf32, #tpu.memory_space<vmem>>) attributes {dimension_semantics = [], scalar_prefetch = 0 : i64, scratch_operands = 0 : i64, tpu.core_type = #tpu.core_type<tc>} {
    %c0 = arith.constant 0 : index
    %c0_0 = arith.constant 0 : index
    %0 = vector.load %arg0[%c0, %c0_0] : memref<8x36xf32, #tpu.memory_space<vmem>>, vector<8x36xf32>
    %c0_1 = arith.constant 0 : index
    %c0_2 = arith.constant 0 : index
    %1 = vector.load %arg3[%c0_1, %c0_2] : memref<36x512xf32, #tpu.memory_space<vmem>>, vector<36x512xf32>
    %cst = arith.constant dense<0.000000e+00> : vector<8x512xf32>
    %2 = tpu.matmul %0, %1, %cst {dimension_numbers = #tpu.dot_dimension_numbers<[1], [0], [0], [1], [0, 0, 1, 1], [], []>} : vector<8x36xf32>, vector<36x512xf32>, vector<8x512xf32> -> vector<8x512xf32>
    %c0_3 = arith.constant 0 : index
    %c0_4 = arith.constant 0 : index
    %3 = vector.load %arg1[%c0_3, %c0_4] : memref<8x1xf32, #tpu.memory_space<vmem>>, vector<8x1xf32>
    %4 = vector.broadcast %3 : vector<8x1xf32> to vector<8x36xf32>
    %5 = arith.mulf %0, %4 : vector<8x36xf32>
    %cst_5 = arith.constant dense<0.000000e+00> : vector<36xf32>
    %6 = vector.multi_reduction <add>, %5, %cst_5 [0] : vector<8x36xf32> to vector<36xf32>
    %7 = vector.shape_cast %6 : vector<36xf32> to vector<1x36xf32>
    %8 = arith.mulf %7, %7 : vector<1x36xf32>
    %9 = vector.shape_cast %8 : vector<1x36xf32> to vector<1x1x36xf32>
    %cst_6 = arith.constant dense<0.000000e+00> : vector<1xf32>
    %10 = vector.multi_reduction <add>, %9, %cst_6 [1, 2] : vector<1x1x36xf32> to vector<1xf32>
    %11 = vector.shape_cast %10 : vector<1xf32> to vector<1x1x1xf32>
    %12 = vector.extract %11[0, 0, 0] : f32 from vector<1x1x1xf32>
    %13 = vector.broadcast %12 : f32 to vector<1x1xf32>
    %cst_7 = arith.constant 1.000000e-24 : f32
    %14 = vector.broadcast %cst_7 : f32 to vector<1x1xf32>
    %15 = arith.addf %13, %14 : vector<1x1xf32>
    %16 = math.rsqrt %15 : vector<1x1xf32>
    %17 = vector.broadcast %16 : vector<1x1xf32> to vector<1x36xf32>
    %18 = arith.mulf %7, %17 : vector<1x36xf32>
    %19 = vector.broadcast %18 : vector<1x36xf32> to vector<8x36xf32>
    %20 = arith.mulf %0, %19 : vector<8x36xf32>
    %cst_8 = arith.constant dense<0.000000e+00> : vector<8xf32>
    %21 = vector.multi_reduction <add>, %20, %cst_8 [1] : vector<8x36xf32> to vector<8xf32>
    %22 = vector.shape_cast %21 : vector<8xf32> to vector<8x1xf32>
    %23 = arith.mulf %22, %22 : vector<8x1xf32>
    %24 = vector.shape_cast %23 : vector<8x1xf32> to vector<1x8x1xf32>
    %cst_9 = arith.constant dense<0.000000e+00> : vector<1xf32>
    %25 = vector.multi_reduction <add>, %24, %cst_9 [1, 2] : vector<1x8x1xf32> to vector<1xf32>
    %26 = vector.shape_cast %25 : vector<1xf32> to vector<1x1x1xf32>
    %27 = vector.extract %26[0, 0, 0] : f32 from vector<1x1x1xf32>
    %28 = vector.broadcast %27 : f32 to vector<1x1xf32>
    %cst_10 = arith.constant 1.000000e-24 : f32
    %29 = vector.broadcast %cst_10 : f32 to vector<1x1xf32>
    %30 = arith.addf %28, %29 : vector<1x1xf32>
    %31 = math.rsqrt %30 : vector<1x1xf32>
    %32 = vector.broadcast %31 : vector<1x1xf32> to vector<8x1xf32>
    %33 = arith.mulf %22, %32 : vector<8x1xf32>
    %34 = arith.mulf %33, %22 : vector<8x1xf32>
    %35 = vector.shape_cast %34 : vector<8x1xf32> to vector<1x8x1xf32>
    %cst_11 = arith.constant dense<0.000000e+00> : vector<1xf32>
    %36 = vector.multi_reduction <add>, %35, %cst_11 [1, 2] : vector<1x8x1xf32> to vector<1xf32>
    %37 = vector.shape_cast %36 : vector<1xf32> to vector<1x1x1xf32>
    %38 = vector.extract %37[0, 0, 0] : f32 from vector<1x1x1xf32>
    %39 = vector.broadcast %38 : f32 to vector<1x1xf32>
    %40 = tpu.reciprocal %39 : vector<1x1xf32> -> vector<1x1xf32>
    %c0_12 = arith.constant 0 : index
    %c0_13 = arith.constant 0 : index
    %41 = vector.load %arg4[%c0_12, %c0_13] : memref<8x1xf32, #tpu.memory_space<vmem>>, vector<8x1xf32>
    %42 = vector.extract_strided_slice %2 {offsets = [0, 0], sizes = [8, 256], strides = [1, 1]} : vector<8x512xf32> to vector<8x256xf32>
    %43 = vector.broadcast %40 : vector<1x1xf32> to vector<8x256xf32>
    %44 = arith.mulf %42, %43 : vector<8x256xf32>
    %45 = vector.broadcast %41 : vector<8x1xf32> to vector<8x256xf32>
    %46 = arith.addf %44, %45 : vector<8x256xf32>
    %c0_14 = arith.constant 0 : index
    %c0_15 = arith.constant 0 : index
    %c0_16 = arith.constant 0 : index
    %47 = vector.load %arg5[%c0_14, %c0_15, %c0_16] : memref<2x8x256xf32, #tpu.memory_space<vmem>>, vector<1x8x256xf32>
    %48 = vector.shape_cast %47 : vector<1x8x256xf32> to vector<8x256xf32>
    %49 = vector.shape_cast %46 : vector<8x256xf32> to vector<1x8x256xf32>
    tpu.vector_store %arg5[%c0_14, %c0_15, %c0_16], %49 {strides = array<i32>} : memref<2x8x256xf32, #tpu.memory_space<vmem>>, vector<1x8x256xf32>,
    %50 = vector.extract_strided_slice %2 {offsets = [0, 256], sizes = [8, 256], strides = [1, 1]} : vector<8x512xf32> to vector<8x256xf32>
    %51 = vector.broadcast %40 : vector<1x1xf32> to vector<8x256xf32>
    %52 = arith.mulf %50, %51 : vector<8x256xf32>
    %53 = vector.broadcast %41 : vector<8x1xf32> to vector<8x256xf32>
    %54 = arith.addf %52, %53 : vector<8x256xf32>
    %c1 = arith.constant 1 : index
    %c0_17 = arith.constant 0 : index
    %c0_18 = arith.constant 0 : index
    %55 = vector.load %arg5[%c1, %c0_17, %c0_18] : memref<2x8x256xf32, #tpu.memory_space<vmem>>, vector<1x8x256xf32>
    %56 = vector.shape_cast %55 : vector<1x8x256xf32> to vector<8x256xf32>
    %57 = vector.shape_cast %54 : vector<8x256xf32> to vector<1x8x256xf32>
    tpu.vector_store %arg5[%c1, %c0_17, %c0_18], %57 {strides = array<i32>} : memref<2x8x256xf32, #tpu.memory_space<vmem>>, vector<1x8x256xf32>,
    %c0_19 = arith.constant 0 : index
    %c0_20 = arith.constant 0 : index
    %58 = vector.load %arg6[%c0_19, %c0_20] : memref<8x1xf32, #tpu.memory_space<vmem>>, vector<8x1xf32>
    tpu.vector_store %arg6[%c0_19, %c0_20], %33 {strides = array<i32>} : memref<8x1xf32, #tpu.memory_space<vmem>>, vector<8x1xf32>,
    %c0_21 = arith.constant 0 : index
    %c0_22 = arith.constant 0 : index
    %59 = vector.load %arg7[%c0_21, %c0_22] : memref<1x36xf32, #tpu.memory_space<vmem>>, vector<1x36xf32>
    tpu.vector_store %arg7[%c0_21, %c0_22], %18 {strides = array<i32>} : memref<1x36xf32, #tpu.memory_space<vmem>>, vector<1x36xf32>,
    return
  }
}

</mosaic_0001>

<llo_original>
// kernel: spectral_norm_conv2d.1
$region0: #{spectral_norm_conv2d.1}
  #allocation0 [shape = 'u32[]', space=smem, size = 0x4, offset = 0x4, fixed_abs, tag = 'smem constant byte address 0x4 - core index']
  #allocation1 [shape = 'u32[144,128]{1,0:T(1,128)}', space=vmem, size = 0x12000, scoped, tag = 'internal scratch']
  %s0 = inlined_call_operand.vmem [shape: f32[8,36], index: 0, kind: input, shape index: {}]
  %s1 = inlined_call_operand.vmem [shape: f32[8,1], index: 1, kind: input, shape index: {}]
  %s2 = inlined_call_operand.vmem [shape: f32[1,36], index: 2, kind: input, shape index: {}]
  %s3 = inlined_call_operand.vmem [shape: f32[36,512], index: 3, kind: input, shape index: {}]
  %s4 = inlined_call_operand.vmem [shape: f32[8,1], index: 4, kind: input, shape index: {}]
  %s5 = inlined_call_operand.vmem [shape: f32[2,8,256], index: 5, kind: output, shape index: {0}]
  %s6 = inlined_call_operand.vmem [shape: f32[8,1], index: 6, kind: output, shape index: {1}]
  %s7 = inlined_call_operand.hbm [shape: f32[1,36], index: 7, kind: output, shape index: {2}]
  %8 = xla_tuple %s5, %s6, %s7
  %s9 = sld [smem:[#allocation0]]
  $region46: #{spectral_norm_conv2d.1} parent=0
    _
  %s11 = ssub.s32 1, %s9
  %s12 = scalar_select 0, %s11, %s9
  $region1: #{spectral_norm_conv2d.1} parent=0
    #allocation2 [shape = 'u8[512]{0}', space=vmem, size = 0x400, scoped, tag = 'output window, operand 2, single buffered']
    #allocation3 [shape = 's32[1]{0}', space=sflag, size = 0x4, scoped, tag = 'scoped memory for spectral_norm_conv2d.1']
    %13 = vsyncpa [#allocation3], 0
    // Predicated region
    $region2: #{spectral_norm_conv2d.1} parent=1 // pred_check
      _
    $region3: #{spectral_norm_conv2d.1} parent=1 // pred_check_branch
      %15 = sbr.rel (0) target = $region5
    $region4: #{spectral_norm_conv2d.1} parent=1 // pred_region
      _
    $region5: #{spectral_norm_conv2d.1} parent=1 // pred_fallthru
      _
    // Predicated region
    $region6: #{spectral_norm_conv2d.1} parent=1 // pred_check
      _
    $region7: #{spectral_norm_conv2d.1} parent=1 // pred_check_branch
      %17 = sbr.rel (0) target = $region9
    $region8: #{spectral_norm_conv2d.1} parent=1 // pred_region
      _
    $region9: #{spectral_norm_conv2d.1} parent=1 // pred_fallthru
      _
    // Predicated region
    $region10: #{spectral_norm_conv2d.1} parent=1 // pred_check
      _
    $region11: #{spectral_norm_conv2d.1} parent=1 // pred_check_branch
      %19 = sbr.rel (0) target = $region13
    $region12: #{spectral_norm_conv2d.1} parent=1 // pred_region
      _
    $region13: #{spectral_norm_conv2d.1} parent=1 // pred_fallthru
      _
    // Predicated region
    $region14: #{spectral_norm_conv2d.1} parent=1 // pred_check
      _
    $region15: #{spectral_norm_conv2d.1} parent=1 // pred_check_branch
      %21 = sbr.rel (0) target = $region17
    $region16: #{spectral_norm_conv2d.1} parent=1 // pred_region
      _
    $region17: #{spectral_norm_conv2d.1} parent=1 // pred_fallthru
      _
    // Predicated region
    $region18: #{spectral_norm_conv2d.1} parent=1 // pred_check
      _
    $region19: #{spectral_norm_conv2d.1} parent=1 // pred_check_branch
      %23 = sbr.rel (0) target = $region21
    $region20: #{spectral_norm_conv2d.1} parent=1 // pred_region
      _
    $region21: #{spectral_norm_conv2d.1} parent=1 // pred_fallthru
      _
    %v24 = vld [vmem:[%s0] sm:$0xff]
    %v25 = vld [vmem:[%s3] sm:$0xff]
    %v26 = vld [vmem:[%s3 + $0x8] sm:$0xff]
    %v27 = vld [vmem:[%s3 + $0x10] sm:$0xff]
    %v28 = vld [vmem:[%s3 + $0x18] sm:$0xff]
    %v29 = vld [vmem:[%s3 + $0x20] sm:$0xff]
    %v30 = vld [vmem:[%s3 + $0x28] sm:$0xff]
    %v31 = vld [vmem:[%s3 + $0x30] sm:$0xff]
    %v32 = vld [vmem:[%s3 + $0x38] sm:$0xff]
    %v33 = vld [vmem:[%s3 + $0x40] sm:$0xff]
    %v34 = vld [vmem:[%s3 + $0x48] sm:$0xff]
    %v35 = vld [vmem:[%s3 + $0x50] sm:$0xff]
    %v36 = vld [vmem:[%s3 + $0x58] sm:$0xff]
    %v37 = vld [vmem:[%s3 + $0x60] sm:$0xff]
    %v38 = vld [vmem:[%s3 + $0x68] sm:$0xff]
    %v39 = vld [vmem:[%s3 + $0x70] sm:$0xff]
    %v40 = vld [vmem:[%s3 + $0x78] sm:$0xff]
    %v41 = vld [vmem:[%s3 + $0x80] sm:$0xf]
    %v42 = vld [vmem:[%s3 + $0x88] sm:$0xf]
    %v43 = vld [vmem:[%s3 + $0x90] sm:$0xf]
    %v44 = vld [vmem:[%s3 + $0x98] sm:$0xf]
    %vm45 = vcmask 293888
    %v47 = vsel %vm45, %v24, 0
    %vm49 = vcmask 1043456
    %v51 = vsel %vm49, %v41, 0
    %v54 = vsel %vm49, %v42, 0
    %v57 = vsel %vm49, %v43, 0
    %v60 = vsel %vm49, %v44, 0
    %62 = vmatprep.subr.mxu0 %v26
    %63 = vmatpush1.msra.mxu0 %v25
    %64 = vmatprep.subr.mxu0 %v30
    %65 = vmatpush1.msra.mxu0 %v29
    %66 = vmatprep.subr.mxu0 %v34
    %67 = vmatpush1.msra.mxu0 %v33
    %68 = vmatprep.subr.mxu0 %v38
    %69 = vmatpush1.msra.mxu0 %v37
    %70 = vmatprep.subr.mxu0 %v54
    %71 = vmatpush1.msra.mxu0 %v51
    %72 = vmatprep.subr.mxu0 0.0
    %73 = vmatpush1.msra.mxu0 0.0
    %74 = vmatprep.subr.mxu0 0.0
    %75 = vmatpush1.msra.mxu0 0.0
    %76 = vmatprep.subr.mxu0 0.0
    %77 = vmatpush1.msra.mxu0 0.0
    %78 = vmatprep.subr.mxu0 0.0
    %79 = vmatpush1.msra.mxu0 0.0
    %80 = vmatprep.subr.mxu0 0.0
    %81 = vmatpush1.msra.mxu0 0.0
    %82 = vmatprep.subr.mxu0 0.0
    %83 = vmatpush1.msra.mxu0 0.0
    %84 = vmatprep.subr.mxu0 0.0
    %85 = vmatpush1.msra.mxu0 0.0
    %86 = vmatprep.subr.mxu0 0.0
    %87 = vmatpush1.msra.mxu0 0.0
    %88 = vmatprep.subr.mxu0 0.0
    %89 = vmatpush1.msra.mxu0 0.0
    %90 = vmatprep.subr.mxu0 0.0
    %91 = vmatpush1.msra.mxu0 0.0
    %92 = vmatprep.subr.mxu0 0.0
    %93 = vmatpush1.msra.mxu0 0.0
    %94 = vmatprep.subr.mxu0 0.0
    %95 = vmatpush1.msra.mxu0 0.0
    %96 = vmatprep.subr.mxu0 0.0
    %97 = vmatpush1.msra.mxu0 0.0
    %98 = vmatprep.subr.mxu0 0.0
    %99 = vmatpush1.msra.mxu0 0.0
    %100 = vmatprep.subr.mxu0 0.0
    %101 = vmatpush1.msra.mxu0 0.0
    %102 = vmatprep.subr.mxu0 0.0
    %103 = vmatpush1.msra.mxu0 0.0
    %104 = vmatprep.subr.mxu0 0.0
    %105 = vmatpush1.msra.mxu0 0.0
    %106 = vmatprep.subr.mxu0 0.0
    %107 = vmatpush1.msra.mxu0 0.0
    %108 = vmatprep.subr.mxu0 0.0
    %109 = vmatpush1.msra.mxu0 0.0
    %110 = vmatprep.subr.mxu0 0.0
    %111 = vmatpush1.msra.mxu0 0.0
    %112 = vmatprep.subr.mxu0 0.0
    %113 = vmatpush1.msra.mxu0 0.0
    %114 = vmatprep.subr.mxu0 0.0
    %115 = vmatpush1.msra.mxu0 0.0
    %116 = vmatprep.subr.mxu0 0.0
    %117 = vmatpush1.msra.mxu0 0.0
    %118 = vmatprep.subr.mxu0 0.0
    %119 = vmatpush1.msra.mxu0 0.0
    %120 = vmatprep.subr.mxu0 0.0
    %121 = vmatpush1.msra.mxu0 0.0
    %122 = vmatprep.subr.mxu0 0.0
    %123 = vmatpush1.msra.mxu0 0.0
    %124 = vmatprep.subr.mxu0 0.0
    %125 = vmatpush1.msra.mxu0 0.0
    %126 = vmatprep.mubr.f32.mxu0 0.0
    %127 = vmatmul.mubr.f32.gmra.mrb[0].mxu0 %v47
    %v128 = vpop.f32.mrb[0].mxu0
    %v129 = vadd.f32 0.0, %v128
    %v130 = vpop.f32.mrb[0].mxu0
    %v131 = vadd.f32 0.0, %v130
    %132 = vdwg.mxu0
    %133 = vmatprep.subr.mxu0 %v28
    %134 = vmatpush1.msra.mxu0 %v27
    %135 = vmatprep.subr.mxu0 %v32
    %136 = vmatpush1.msra.mxu0 %v31
    %137 = vmatprep.subr.mxu0 %v36
    %138 = vmatpush1.msra.mxu0 %v35
    %139 = vmatprep.subr.mxu0 %v40
    %140 = vmatpush1.msra.mxu0 %v39
    %141 = vmatprep.subr.mxu0 %v60
    %142 = vmatpush1.msra.mxu0 %v57
    %143 = vmatprep.subr.mxu0 0.0
    %144 = vmatpush1.msra.mxu0 0.0
    %145 = vmatprep.subr.mxu0 0.0
    %146 = vmatpush1.msra.mxu0 0.0
    %147 = vmatprep.subr.mxu0 0.0
    %148 = vmatpush1.msra.mxu0 0.0
    %149 = vmatprep.subr.mxu0 0.0
    %150 = vmatpush1.msra.mxu0 0.0
    %151 = vmatprep.subr.mxu0 0.0
    %152 = vmatpush1.msra.mxu0 0.0
    %153 = vmatprep.subr.mxu0 0.0
    %154 = vmatpush1.msra.mxu0 0.0
    %155 = vmatprep.subr.mxu0 0.0
    %156 = vmatpush1.msra.mxu0 0.0
    %157 = vmatprep.subr.mxu0 0.0
    %158 = vmatpush1.msra.mxu0 0.0
    %159 = vmatprep.subr.mxu0 0.0
    %160 = vmatpush1.msra.mxu0 0.0
    %161 = vmatprep.subr.mxu0 0.0
    %162 = vmatpush1.msra.mxu0 0.0
    %163 = vmatprep.subr.mxu0 0.0
    %164 = vmatpush1.msra.mxu0 0.0
    %165 = vmatprep.subr.mxu0 0.0
    %166 = vmatpush1.msra.mxu0 0.0
    %167 = vmatprep.subr.mxu0 0.0
    %168 = vmatpush1.msra.mxu0 0.0
    %169 = vmatprep.subr.mxu0 0.0
    %170 = vmatpush1.msra.mxu0 0.0
    %171 = vmatprep.subr.mxu0 0.0
    %172 = vmatpush1.msra.mxu0 0.0
    %173 = vmatprep.subr.mxu0 0.0
    %174 = vmatpush1.msra.mxu0 0.0
    %175 = vmatprep.subr.mxu0 0.0
    %176 = vmatpush1.msra.mxu0 0.0
    %177 = vmatprep.subr.mxu0 0.0
    %178 = vmatpush1.msra.mxu0 0.0
    %179 = vmatprep.subr.mxu0 0.0
    %180 = vmatpush1.msra.mxu0 0.0
    %181 = vmatprep.subr.mxu0 0.0
    %182 = vmatpush1.msra.mxu0 0.0
    %183 = vmatprep.subr.mxu0 0.0
    %184 = vmatpush1.msra.mxu0 0.0
    %185 = vmatprep.subr.mxu0 0.0
    %186 = vmatpush1.msra.mxu0 0.0
    %187 = vmatprep.subr.mxu0 0.0
    %188 = vmatpush1.msra.mxu0 0.0
    %189 = vmatprep.subr.mxu0 0.0
    %190 = vmatpush1.msra.mxu0 0.0
    %191 = vmatprep.subr.mxu0 0.0
    %192 = vmatpush1.msra.mxu0 0.0
    %193 = vmatprep.subr.mxu0 0.0
    %194 = vmatpush1.msra.mxu0 0.0
    %195 = vmatprep.subr.mxu0 0.0
    %196 = vmatpush1.msra.mxu0 0.0
    %197 = vmatprep.mubr.f32.mxu0 0.0
    %198 = vmatmul.mubr.f32.gmra.mrb[0].mxu0 %v47
    %v199 = vpop.f32.mrb[0].mxu0
    %v200 = vadd.f32 0.0, %v199
    %v201 = vpop.f32.mrb[0].mxu0
    %v202 = vadd.f32 0.0, %v201
    %203 = vdwg.mxu0
    %v204 = vld [vmem:[%s1] sm:$0xff]
    %206 = vset.pattern.permute.xlu0 0
    %207 = vperm.xlu0 %206, %v204
    %v208 = vpop.permute.xlu0 %207
    %v210 = vmul.f32 %v24, %v208
    %v211 = vsel %vm45, %v210, 0.0
    %v212 = vrot.slane %v211, 4
    %v213 = vadd.f32 %v211, %v212
    %v214 = vrot.slane %v213, 2
    %v215 = vadd.f32 %v213, %v214
    %v216 = vrot.slane %v215, 1
    %v217 = vadd.f32 %v215, %v216
    %v218 = vmul.f32 %v217, %v217
    %vm219 = vcmask 286720
    %v220 = vsel %vm219, %v218, 0.0
    %221 = vadd.xlane.f32.xlu0 %v220
    %v222 = vpop.xlane.xlu0 %221
    %v223 = vrot.slane %v222, 4
    %v224 = vadd.f32 %v222, %v223
    %v225 = vrot.slane %v224, 2
    %v226 = vadd.f32 %v224, %v225
    %v227 = vrot.slane %v226, 1
    %v228 = vadd.f32 %v226, %v227
    %s229 = vtos %v228
    %v230 = vstv %s229
    %v231 = vadd.f32 %v230, 1e-24
    %v232 = vrsqrt.pop %v231
    %v233 = vmul.f32 %v217, %v232
    %v234 = vmul.f32 %v24, %v233
    %v235 = vsel %vm45, %v234, 0.0
    %236 = vadd.xlane.f32.xlu0 %v235
    %v237 = vpop.xlane.xlu0 %236
    %v238 = vmul.f32 %v237, %v237
    %vm239 = vcmask 7168
    %v240 = vsel %vm239, %v238, 0.0
    %241 = vadd.xlane.f32.xlu0 %v240
    %v242 = vpop.xlane.xlu0 %241
    %v243 = vrot.slane %v242, 4
    %v244 = vadd.f32 %v242, %v243
    %v245 = vrot.slane %v244, 2
    %v246 = vadd.f32 %v244, %v245
    %v247 = vrot.slane %v246, 1
    %v248 = vadd.f32 %v246, %v247
    %s249 = vtos %v248
    %v250 = vstv %s249
    %v251 = vadd.f32 %v250, 1e-24
    %v252 = vrsqrt.pop %v251
    %v253 = vmul.f32 %v237, %v252
    %v254 = vmul.f32 %v253, %v237
    %v255 = vsel %vm239, %v254, 0.0
    %256 = vadd.xlane.f32.xlu0 %v255
    %v257 = vpop.xlane.xlu0 %256
    %v258 = vrot.slane %v257, 4
    %v259 = vadd.f32 %v257, %v258
    %v260 = vrot.slane %v259, 2
    %v261 = vadd.f32 %v259, %v260
    %v262 = vrot.slane %v261, 1
    %v263 = vadd.f32 %v261, %v262
    %s264 = vtos %v263
    %v265 = vstv %s264
    %v266 = vrcp.pop %v265
    %v267 = vld [vmem:[%s4] sm:$0xff]
    %v268 = vmul.f32 %v129, %v266
    %v269 = vmul.f32 %v131, %v266
    %271 = vset.pattern.permute.xlu0 0
    %272 = vperm.xlu0 %271, %v267
    %v273 = vpop.permute.xlu0 %272
    %v275 = vadd.f32 %v268, %v273
    %v276 = vadd.f32 %v269, %v273
    %277 = vst [vmem:[%s5] sm:$0xff] %v275
    %278 = vst [vmem:[%s5 + $0x8] sm:$0xff] %v276
    %v279 = vmul.f32 %v200, %v266
    %v280 = vmul.f32 %v202, %v266
    %v281 = vadd.f32 %v279, %v273
    %v282 = vadd.f32 %v280, %v273
    %s283 = scalar_lea.vmem %s5, 16
    %284 = vst [vmem:[%s283] sm:$0xff] %v281
    %285 = vst [vmem:[%s283 + $0x8] sm:$0xff] %v282
    %286 = vst.msk [vmem:[%s6] sm:$0xff] %vm239, %v253
    %287 = vst.msk [vmem:[#allocation2] sm:$0x1] %vm219, %v233
    // Predicated region
    $region22: #{spectral_norm_conv2d.1} parent=1 // pred_check
      _
    $region23: #{spectral_norm_conv2d.1} parent=1 // pred_check_branch
      %289 = sbr.rel (0) target = $region25
    $region24: #{spectral_norm_conv2d.1} parent=1 // pred_region
      _
    $region25: #{spectral_norm_conv2d.1} parent=1 // pred_fallthru
      _
    // Predicated region
    $region26: #{spectral_norm_conv2d.1} parent=1 // pred_check
      _
    $region27: #{spectral_norm_conv2d.1} parent=1 // pred_check_branch
      %291 = sbr.rel (0) target = $region29
    $region28: #{spectral_norm_conv2d.1} parent=1 // pred_region
      _
    $region29: #{spectral_norm_conv2d.1} parent=1 // pred_fallthru
      _
    // Predicated region
    $region30: #{spectral_norm_conv2d.1} parent=1 // pred_check
      _
    $region31: #{spectral_norm_conv2d.1} parent=1 // pred_check_branch
      %293 = sbr.rel (0) target = $region33
    $region32: #{spectral_norm_conv2d.1} parent=1 // pred_region
      %s295 = ssub.s32 16, 16
      %296 = vsyncadd [#allocation3], %s295
      %s298 = sshll.u32 [#allocation2], 4
      %s299 = int_to_ptr.vmem [resolvable:$true] %s298
      %301 = dma.vmem_to_hbm [thread:$0]  %s299, 16, %s7, [#allocation3]
    $region33: #{spectral_norm_conv2d.1} parent=1 // pred_fallthru
      _
    // Predicated region
    $region34: #{spectral_norm_conv2d.1} parent=1 // pred_check
      _
    $region35: #{spectral_norm_conv2d.1} parent=1 // pred_check_branch
      %303 = sbr.rel (0) target = $region37
    $region36: #{spectral_norm_conv2d.1} parent=1 // pred_region
      _
    $region37: #{spectral_norm_conv2d.1} parent=1 // pred_fallthru
      _
    // Predicated region
    $region38: #{spectral_norm_conv2d.1} parent=1 // pred_check
      _
    $region39: #{spectral_norm_conv2d.1} parent=1 // pred_check_branch
      %305 = sbr.rel (0) target = $region41
    $region40: #{spectral_norm_conv2d.1} parent=1 // pred_region
      _
    $region41: #{spectral_norm_conv2d.1} parent=1 // pred_fallthru
      _
    // Predicated region
    $region42: #{spectral_norm_conv2d.1} parent=1 // pred_check
      _
    $region43: #{spectral_norm_conv2d.1} parent=1 // pred_check_branch
      %307 = sbr.rel (0) target = $region45
    $region44: #{spectral_norm_conv2d.1} parent=1 // pred_region
      %308 = dma.done [#allocation3], 16
    $region45: #{spectral_norm_conv2d.1} parent=1 // pred_fallthru
      _
    %309 = vsyncpa [#allocation3], 1

</llo_original>
